<compile_context>
chip_gen: v5e
topology: v5e:2x2
jax: 0.10.0
libtpu: 0.0.40
codegen_flags: <defaults>
</compile_context>

<pallas_src>
import math

import jax
import jax.numpy as jnp
from jax.experimental import pallas as pl
from jax.experimental.pallas import tpu as pltpu

_LANE = 128
_BLOCK_BUDGET_BYTES = 6 << 20   # one logical block; x4 after in/out double-buffering
_VMEM_LIMIT_BYTES = 40 << 20    # explicit scoped-VMEM limit (safe on v5e/v6e/v7x)


def _copy_kernel(x_ref, o_ref):
    # Pure streaming copy of one sublane/lane-dense block.
    o_ref[...] = x_ref[...]


def _sublane_tile(dtype):
    # f32 -> 8, bf16/f16 -> 16, int8/fp8 -> 32.
    return max(8, 32 // jnp.dtype(dtype).itemsize)


def _choose_slab(total, sublane):
    """Factor `total` into (rows, lanes), lanes % 128 == 0, preferring rows % sublane == 0."""
    best_any = None
    for lanes in (4096, 2048, 1024, 512, 256, 128):
        if total % lanes == 0:
            rows = total // lanes
            if rows % sublane == 0:
                return rows, lanes
            if best_any is None:
                best_any = (rows, lanes)
    return best_any  # None iff total % 128 != 0


def _choose_row_block(rows, lanes, sublane, dtype_size):
    """Sublane-multiple row block sized to the budget, split to >=2 blocks when possible."""
    rows_by_budget = (_BLOCK_BUDGET_BYTES // (lanes * dtype_size)) // sublane * sublane
    row_block = min(rows, max(sublane, rows_by_budget))
    if row_block < rows:
        row_block = max(sublane, (row_block // sublane) * sublane)
    elif rows >= 2 * sublane:
        # Whole slab fits in one block; split so the "parallel" axis can use both
        # v7x TensorCores (ragged tail handled by Pallas).
        half = pl.cdiv(rows, 2)
        row_block = max(sublane, pl.cdiv(half, sublane) * sublane)
    return row_block


def flatten_forward(x):
    """Pallas equivalent of torch `x.view(batch_size, -1)`."""
    n = x.shape[0]
    flat = int(math.prod(x.shape[1:]))
    total = n * flat
    dtype_size = jnp.dtype(x.dtype).itemsize
    sublane = _sublane_tile(x.dtype)

    # NOTE: flatten is metadata-only; absent an explicit kernel-boundary
    # requirement, `jnp.reshape(x, (n, flat))` alone is the optimal impl.
    cost = pl.CostEstimate(flops=0, transcendentals=0,
                           bytes_accessed=2 * total * dtype_size)
    cparams = pltpu.CompilerParams(
        dimension_semantics=("parallel",),
        vmem_limit_bytes=_VMEM_LIMIT_BYTES,
    )

    slab = _choose_slab(total, sublane)
    if slab is not None:
        rows, lanes = slab
        row_block = _choose_row_block(rows, lanes, sublane, dtype_size)
        grid = (pl.cdiv(rows, row_block),)
        x_slab = jnp.reshape(x, (rows, lanes))  # metadata-only
        out = pl.pallas_call(
            _copy_kernel,
            out_shape=jax.ShapeDtypeStruct((rows, lanes), x.dtype),
            grid=grid,
            in_specs=[pl.BlockSpec((row_block, lanes), lambda i: (i, 0))],
            out_specs=pl.BlockSpec((row_block, lanes), lambda i: (i, 0)),
            compiler_params=cparams,
            cost_estimate=cost,
        )(x_slab)
        return jnp.reshape(out, (n, flat))      # metadata-only

    # Fallback (total % 128 != 0): tile the logical (n, flat) view with
    # 128-multiple column tiles and a cdiv grid; Pallas pads the ragged
    # final block and drops out-of-bounds writes.
    x2d = jnp.reshape(x, (n, flat))
    if flat < _LANE:
        col_tile = flat  # full-extent last dim is always a legal block shape
    else:
        max_cols = max(
            _LANE,
            (_BLOCK_BUDGET_BYTES // max(1, n * dtype_size)) // _LANE * _LANE,
        )
        col_tile = min(max_cols, (flat // _LANE) * _LANE)
    grid = (pl.cdiv(flat, col_tile),)
    return pl.pallas_call(
        _copy_kernel,
        out_shape=jax.ShapeDtypeStruct((n, flat), x.dtype),
        grid=grid,
        in_specs=[pl.BlockSpec((n, col_tile), lambda j: (0, j))],
        out_specs=pl.BlockSpec((n, col_tile), lambda j: (0, j)),
        compiler_params=cparams,
        cost_estimate=cost,
    )(x2d)


if __name__ == "__main__":
    key = jax.random.PRNGKey(0)
    # Small shapes consistent with a conv feature map going into Flatten.
    N, C, H, W = 2, 4, 16, 16
    x = jax.random.normal(key, (N, C, H, W), dtype=jnp.float32)

    y = flatten_forward(x)
    jax.block_until_ready(y)

    # Reference: row-major flatten, identical to torch .view(batch, -1).
    y_ref = jnp.reshape(x, (N, C * H * W))
    assert y.shape == (N, C * H * W), y.shape
    assert y.dtype == x.dtype
    assert bool(jnp.array_equal(y, y_ref)), "mismatch vs reference flatten"

    print("KERNEL_OK")
</pallas_src>

<mosaic_0001>
module attributes {stable_mosaic.version = 11 : i64} {
  func.func @_copy_kernel(%arg0: i32, %arg1: memref<8x256xf32, #tpu.memory_space<vmem>>, %arg2: memref<8x256xf32, #tpu.memory_space<vmem>>) attributes {dimension_semantics = [#tpu.dimension_semantics<parallel>], iteration_bounds = array<i64: 1>, scalar_prefetch = 0 : i64, scratch_operands = 0 : i64, tpu.core_type = #tpu.core_type<tc>, window_params = [{transform_indices = @transform_0, window_bounds = array<i64: 8, 256>}, {transform_indices = @transform_1, window_bounds = array<i64: 8, 256>}]} {
    %c0 = arith.constant 0 : index
    %c0_0 = arith.constant 0 : index
    %0 = vector.load %arg1[%c0, %c0_0] : memref<8x256xf32, #tpu.memory_space<vmem>>, vector<8x256xf32>
    %c0_1 = arith.constant 0 : index
    %c0_2 = arith.constant 0 : index
    %1 = vector.load %arg2[%c0_1, %c0_2] : memref<8x256xf32, #tpu.memory_space<vmem>>, vector<8x256xf32>
    tpu.vector_store %arg2[%c0_1, %c0_2], %0 {strides = array<i32>} : memref<8x256xf32, #tpu.memory_space<vmem>>, vector<8x256xf32>,
    return
  }
  func.func @transform_0(%arg0: i32) -> (i32, i32) {
    %c0_i32 = arith.constant 0 : i32
    %c0_i32_0 = arith.constant 0 : i32
    return %arg0, %c0_i32 : i32, i32
  }
  func.func @transform_1(%arg0: i32) -> (i32, i32) {
    %c0_i32 = arith.constant 0 : i32
    %c0_i32_0 = arith.constant 0 : i32
    return %arg0, %c0_i32 : i32, i32
  }
}

</mosaic_0001>

<llo_original>
// kernel: tpu_custom_call.1
$region0: #{tpu_custom_call.1}
  #allocation0 [shape = 'u32[]', space=smem, size = 0x4, offset = 0x4, fixed_abs, tag = 'smem constant byte address 0x4 - core index']
  #allocation1 [shape = 'u32[72,128]{1,0:T(1,128)}', space=vmem, size = 0x9000, scoped, tag = 'internal scratch']
  %s0 = inlined_call_operand.hbm [shape: f32[8,256], index: 0, kind: input, shape index: {}]
  %s1 = inlined_call_operand.hbm [shape: f32[8,256], index: 1, kind: output, shape index: {}]
  %s2 = sld [smem:[#allocation0]]
  $region18: #{tpu_custom_call.1} parent=0
    _
  %s4 = ssub.s32 1, %s2
  %s5 = scalar_select 0, %s4, %s2
  $region1: #{tpu_custom_call.1} parent=0
    #allocation2 [shape = 'u8[8192]{0}', space=vmem, size = 0x2000, scoped, tag = 'input window, operand 0, single buffered']
    #allocation3 [shape = 's32[1]{0}', space=sflag, size = 0x4, scoped, tag = 'scoped memory for tpu_custom_call.1']
    #allocation4 [shape = 's32[1]{0}', space=sflag, size = 0x4, scoped, tag = 'scoped memory for tpu_custom_call.1']
    #allocation5 [shape = 'u8[8192]{0}', space=vmem, size = 0x2000, scoped, tag = 'output window, operand 0, single buffered']
    %6 = vsyncpa [#allocation3], 0
    %7 = vsyncpa [#allocation4], 0
    // Predicated region
    $region2: #{tpu_custom_call.1} parent=1 // pred_check
      _
    $region3: #{tpu_custom_call.1} parent=1 // pred_check_branch
      %9 = sbr.rel (0) target = $region5
    $region4: #{tpu_custom_call.1} parent=1 // pred_region
      %11 = vsyncadd [#allocation3], 0
      %s13 = sshll.u32 %s0, 4
      %s14 = int_to_ptr.hbm [resolvable:$true] %s13
      %s15 = sshll.u32 [#allocation2], 4
      %s16 = int_to_ptr.vmem [resolvable:$true] %s15
      %18 = dma.hbm_to_vmem [thread:$0]  %s14, 256, %s16, [#allocation3]
    $region5: #{tpu_custom_call.1} parent=1 // pred_fallthru
      _
    // Predicated region
    $region6: #{tpu_custom_call.1} parent=1 // pred_check
      _
    $region7: #{tpu_custom_call.1} parent=1 // pred_check_branch
      %20 = sbr.rel (0) target = $region9
    $region8: #{tpu_custom_call.1} parent=1 // pred_region
      %22 = dma.done [#allocation3], 256
    $region9: #{tpu_custom_call.1} parent=1 // pred_fallthru
      _
    %v23 = vld [vmem:[#allocation2] sm:$0xff]
    %v24 = vld [vmem:[#allocation2 + $0x8] sm:$0xff]
    %25 = vst [vmem:[#allocation5] sm:$0xff] %v23
    %26 = vst [vmem:[#allocation5 + $0x8] sm:$0xff] %v24
    // Predicated region
    $region10: #{tpu_custom_call.1} parent=1 // pred_check
      _
    $region11: #{tpu_custom_call.1} parent=1 // pred_check_branch
      %28 = sbr.rel (0) target = $region13
    $region12: #{tpu_custom_call.1} parent=1 // pred_region
      %30 = vsyncadd [#allocation4], 0
      %s32 = sshll.u32 [#allocation5], 4
      %s33 = int_to_ptr.vmem [resolvable:$true] %s32
      %s34 = sshll.u32 %s1, 4
      %s35 = int_to_ptr.hbm [resolvable:$true] %s34
      %37 = dma.vmem_to_hbm [thread:$0]  %s33, 256, %s35, [#allocation4]
    $region13: #{tpu_custom_call.1} parent=1 // pred_fallthru
      _
    // Predicated region
    $region14: #{tpu_custom_call.1} parent=1 // pred_check
      _
    $region15: #{tpu_custom_call.1} parent=1 // pred_check_branch
      %39 = sbr.rel (0) target = $region17
    $region16: #{tpu_custom_call.1} parent=1 // pred_region
      %41 = dma.done [#allocation4], 256
    $region17: #{tpu_custom_call.1} parent=1 // pred_fallthru
      _
    %42 = vsyncpa [#allocation3], 1
    %43 = vsyncpa [#allocation4], 1

</llo_original>
